<compile_context>
chip_gen: v5e
topology: v5e:2x2
jax: 0.10.0
libtpu: 0.0.40
codegen_flags: <defaults>
</compile_context>

<pallas_src>
import functools

import jax
import jax.numpy as jnp
from jax.experimental import pallas as pl
from jax.experimental.pallas import tpu as pltpu

ALPHA = 0.7
MARGIN = 0.3
COS_EPS = 1e-8  # F.cosine_similarity default eps


def _vmem_budgets():
    """Generation-aware VMEM budgets: (tile_budget_bytes, vmem_limit_bytes)."""
    cap = 64 << 20                                   # conservative fallback (v7x/TC)
    try:
        info = pltpu.get_tpu_info()
        cap = int(getattr(info, "vmem_capacity_bytes", cap)) or cap
    except Exception:
        pass
    limit = min(int(cap * 0.8), 112 << 20)           # headroom for Mosaic scratch
    budget = max(limit - (8 << 20), 8 << 20)         # headroom for ce/lbl/out buffers
    return budget, limit


def _choose_tb(B, L, D, elt_bytes, budget):
    """Batch-tile size so 3 inputs x 2 pipeline buffers of (TB, L, D) fit the budget."""
    sub = {1: 32, 2: 16}.get(elt_bytes, 8)
    lp = -(-L // sub) * sub                   # second-minor padded to sublane tile
    dp = -(-D // 128) * 128                   # minor padded to lane tile
    per_row = 3 * 2 * lp * dp * elt_bytes     # 3 inputs x double-buffered, native dtype
    tb = max(int(budget // per_row), 1)
    tb = min(tb, B)
    if B >= 2:
        tb = min(tb, -(-B // 2))              # >= 2 blocks: both v7x TCs get work
    nb = -(-B // tb)
    tb = -(-B // nb)                          # even out block sizes (TC load balance)
    return max(tb, 1)


def _hybrid_loss_kernel(q_ref, p_ref, n_ref, ce_ref, lbl_ref, out_ref,
                        *, true_b, tb, alpha, margin, inv_l, d_true, packed):
    pid = pl.program_id(0)
    last = pl.num_programs(0) - 1

    def mean_pool(ref):
        # fused mean-pool over the (packed) token axis; f32 accumulation,
        # no full f32 tile copy materialized.
        s = jnp.sum(ref[...], axis=1, dtype=jnp.float32)       # [TB, lanes]
        if packed:
            w = ref.shape[-1]                                   # 128
            while w > d_true:                                   # unrolled at trace time
                w //= 2
                s = s + pltpu.roll(s, shift=w, axis=1)          # XLU lane fold
            lane = jax.lax.broadcasted_iota(jnp.int32, s.shape, 1)
            s = jnp.where(lane < d_true, s, 0.0)                # zero garbage lanes
        return s * inv_l

    qm = mean_pool(q_ref)                                       # [TB, D or 128]
    pm = mean_pool(p_ref)
    nm = mean_pool(n_ref)

    # cosine similarity, faithful to torch: dot / sqrt(max(|a|^2*|b|^2, eps^2))
    qq = jnp.sum(qm * qm, axis=-1, keepdims=True)               # [TB, 1]
    pp = jnp.sum(pm * pm, axis=-1, keepdims=True)
    nn = jnp.sum(nm * nm, axis=-1, keepdims=True)
    qp = jnp.sum(qm * pm, axis=-1, keepdims=True)
    qn = jnp.sum(qm * nm, axis=-1, keepdims=True)

    eps2 = COS_EPS * COS_EPS
    pos_sim = qp / jnp.sqrt(jnp.maximum(qq * pp, eps2))
    neg_sim = qn / jnp.sqrt(jnp.maximum(qq * nn, eps2))

    # triplet hinge, masked to the true batch (last block may be padded);
    # keep jnp.where (not hinge*mask) so padded-row NaN/Inf never propagates.
    hinge = jnp.maximum(neg_sim - pos_sim + margin, 0.0)        # [TB, 1]
    row = jax.lax.broadcasted_iota(jnp.int32, hinge.shape, 0) + pid * tb
    hinge = jnp.where(row < true_b, hinge, 0.0)

    partial = (alpha / true_b) * jnp.sum(hinge)

    # BCEWithLogits (mean) computed exactly once, on the last grid step.
    @pl.when(pid == last)
    def _():
        x = ce_ref[...].astype(jnp.float32)     # [1, B]
        y = lbl_ref[...].astype(jnp.float32)    # [1, B]
        bce = jnp.maximum(x, 0.0) - x * y + jnp.log1p(jnp.exp(-jnp.abs(x)))
        out_ref[...] = jnp.full(out_ref.shape,
                                partial + (1.0 - alpha) * jnp.mean(bce),
                                jnp.float32)

    @pl.when(pid < last)
    def _():
        out_ref[...] = jnp.full(out_ref.shape, partial, jnp.float32)


def hybrid_loss(query_emb, pos_emb, neg_emb, ce_scores, labels,
                *, alpha=ALPHA, margin=MARGIN, tb=None):
    """query/pos/neg_emb: [B, L, D] (any float dtype); ce_scores: [B] or [B,1]; labels: [B]."""
    B, L, D = query_emb.shape
    elt = jnp.dtype(query_emb.dtype).itemsize

    # Lane-density repack: if D < 128 but D | 128 and 128 | L*D, present the
    # embeddings as [B, L*D/128, 128] (free contiguous reshape) so every vreg
    # lane is used; for D % 128 == 0 the direct layout is already lane-dense.
    packed = (D < 128) and (128 % D == 0) and ((L * D) % 128 == 0)
    if packed:
        L_eff, D_eff = (L * D) // 128, 128
        q_in = query_emb.reshape(B, L_eff, D_eff)
        p_in = pos_emb.reshape(B, L_eff, D_eff)
        n_in = neg_emb.reshape(B, L_eff, D_eff)
    else:
        L_eff, D_eff = L, D
        q_in, p_in, n_in = query_emb, pos_emb, neg_emb

    budget, vmem_limit = _vmem_budgets()
    TB = _choose_tb(B, L_eff, D_eff, elt, budget) if tb is None else max(1, min(tb, B))
    num_blocks = (B + TB - 1) // TB

    # glue: squeeze + lane-dense layout for the per-sample score/label vectors
    ce2d = jnp.reshape(ce_scores, (1, B)).astype(jnp.float32)
    lbl2d = jnp.reshape(labels, (1, B)).astype(jnp.float32)

    kernel = functools.partial(_hybrid_loss_kernel,
                               true_b=B, tb=TB, alpha=float(alpha),
                               margin=float(margin), inv_l=1.0 / L,
                               d_true=D, packed=packed)

    emb_spec = pl.BlockSpec((TB, L_eff, D_eff), lambda i: (i, 0, 0))
    vec_spec = pl.BlockSpec((1, B), lambda i: (0, 0))   # constant block -> fetched once

    cost = pl.CostEstimate(
        flops=9 * B * L * D,
        transcendentals=3 * B,
        bytes_accessed=3 * B * L * D * elt + 2 * B * 4 + num_blocks * 8 * 128 * 4,
    )

    partials = pl.pallas_call(
        kernel,
        out_shape=jax.ShapeDtypeStruct((num_blocks, 8, 128), jnp.float32),
        grid_spec=pltpu.PrefetchScalarGridSpec(
            num_scalar_prefetch=0,
            grid=(num_blocks,),
            in_specs=[emb_spec, emb_spec, emb_spec, vec_spec, vec_spec],
            out_specs=pl.BlockSpec((1, 8, 128), lambda i: (i, 0, 0)),
        ),
        compiler_params=pltpu.CompilerParams(
            dimension_semantics=("parallel",),          # shards across TCs on v7x
            vmem_limit_bytes=vmem_limit,
        ),
        cost_estimate=cost,
    )(q_in, p_in, n_in, ce2d, lbl2d)

    # tiny final reduction over per-block partials (alpha/BCE already folded in)
    return jnp.sum(partials[:, 0, 0])


def _reference(query_emb, pos_emb, neg_emb, ce_scores, labels,
               alpha=ALPHA, margin=MARGIN):
    qm = query_emb.astype(jnp.float32).mean(1)
    pm = pos_emb.astype(jnp.float32).mean(1)
    nm = neg_emb.astype(jnp.float32).mean(1)

    def cos(a, b):
        w12 = jnp.sum(a * b, axis=-1)
        w1 = jnp.sum(a * a, axis=-1)
        w2 = jnp.sum(b * b, axis=-1)
        return w12 / jnp.sqrt(jnp.maximum(w1 * w2, COS_EPS * COS_EPS))

    triplet = jnp.mean(jax.nn.relu(cos(qm, nm) - cos(qm, pm) + margin))
    x = jnp.reshape(ce_scores, (-1,)).astype(jnp.float32)
    y = jnp.reshape(labels, (-1,)).astype(jnp.float32)
    bce = jnp.mean(jnp.maximum(x, 0.0) - x * y + jnp.log1p(jnp.exp(-jnp.abs(x))))
    return alpha * triplet + (1.0 - alpha) * bce


if __name__ == "__main__":
    key = jax.random.PRNGKey(0)

    # case 1: D=32 exercises the lane-density repack path; TB auto-chosen
    # (capped to >= 2 blocks so the BCE-on-last-step gating is also covered).
    B, L, D = 2, 8, 32
    k1, k2, k3, k4, k5, k6 = jax.random.split(key, 6)
    query_emb = jax.random.normal(k1, (B, L, D), dtype=jnp.float32)
    pos_emb = jax.random.normal(k2, (B, L, D), dtype=jnp.float32)
    neg_emb = jax.random.normal(k3, (B, L, D), dtype=jnp.float32)
    ce_scores = jax.random.normal(k4, (B, 1), dtype=jnp.float32)
    labels = (jax.random.uniform(k5, (B,)) > 0.5).astype(jnp.float32)

    loss = hybrid_loss(query_emb, pos_emb, neg_emb, ce_scores, labels)
    jax.block_until_ready(loss)
    ref = _reference(query_emb, pos_emb, neg_emb, ce_scores, labels)
    assert jnp.allclose(loss, ref, atol=1e-5, rtol=1e-5), (loss, ref)

    # case 2: multi-block grid with a ragged last tile (B % TB != 0), packed path
    B2 = 5
    q2 = jax.random.normal(k6, (B2, L, D), dtype=jnp.float32)
    p2 = jax.random.normal(k1, (B2, L, D), dtype=jnp.float32)
    n2 = jax.random.normal(k2, (B2, L, D), dtype=jnp.float32)
    ce2 = jax.random.normal(k3, (B2, 1), dtype=jnp.float32)
    lb2 = (jax.random.uniform(k4, (B2,)) > 0.5).astype(jnp.float32)

    loss2 = hybrid_loss(q2, p2, n2, ce2, lb2, tb=2)
    jax.block_until_ready(loss2)
    ref2 = _reference(q2, p2, n2, ce2, lb2)
    assert jnp.allclose(loss2, ref2, atol=1e-5, rtol=1e-5), (loss2, ref2)

    # case 3: D=128 (production ColBERT dim) -> direct lane-dense path,
    # auto-chosen TB with a ragged last block (B=3 -> blocks of 2 and 1).
    B3, L3, D3 = 3, 8, 128
    q3 = jax.random.normal(k5, (B3, L3, D3), dtype=jnp.float32)
    p3 = jax.random.normal(k6, (B3, L3, D3), dtype=jnp.float32)
    n3 = jax.random.normal(k1, (B3, L3, D3), dtype=jnp.float32)
    ce3 = jax.random.normal(k2, (B3, 1), dtype=jnp.float32)
    lb3 = (jax.random.uniform(k3, (B3,)) > 0.5).astype(jnp.float32)

    loss3 = hybrid_loss(q3, p3, n3, ce3, lb3)
    jax.block_until_ready(loss3)
    ref3 = _reference(q3, p3, n3, ce3, lb3)
    assert jnp.allclose(loss3, ref3, atol=1e-5, rtol=1e-5), (loss3, ref3)

    print("KERNEL_OK")
</pallas_src>

<mosaic_0001>
module attributes {stable_mosaic.version = 11 : i64} {
  func.func @_hybrid_loss_kernel(%arg0: i32, %arg1: memref<1x2x128xf32, #tpu.memory_space<vmem>>, %arg2: memref<1x2x128xf32, #tpu.memory_space<vmem>>, %arg3: memref<1x2x128xf32, #tpu.memory_space<vmem>>, %arg4: memref<1x2xf32, #tpu.memory_space<vmem>>, %arg5: memref<1x2xf32, #tpu.memory_space<vmem>>, %arg6: memref<1x8x128xf32, #tpu.memory_space<vmem>>) attributes {dimension_semantics = [#tpu.dimension_semantics<parallel>], iteration_bounds = array<i64: 2>, scalar_prefetch = 0 : i64, scratch_operands = 0 : i64, tpu.core_type = #tpu.core_type<tc>, window_params = [{transform_indices = @transform_0, window_bounds = array<i64: 1, 2, 128>}, {transform_indices = @transform_1, window_bounds = array<i64: 1, 2, 128>}, {transform_indices = @transform_2, window_bounds = array<i64: 1, 2, 128>}, {pipeline_mode = #tpu.pipeline_mode<synchronous>, transform_indices = @transform_3, window_bounds = array<i64: 1, 2>}, {pipeline_mode = #tpu.pipeline_mode<synchronous>, transform_indices = @transform_4, window_bounds = array<i64: 1, 2>}, {transform_indices = @transform_5, window_bounds = array<i64: 1, 8, 128>}]} {
    %c0 = arith.constant 0 : index
    %c0_0 = arith.constant 0 : index
    %c0_1 = arith.constant 0 : index
    %0 = vector.load %arg1[%c0, %c0_0, %c0_1] : memref<1x2x128xf32, #tpu.memory_space<vmem>>, vector<1x2x128xf32>
    %cst = arith.constant dense<0.000000e+00> : vector<1x128xf32>
    %1 = vector.multi_reduction <add>, %0, %cst [1] : vector<1x2x128xf32> to vector<1x128xf32>
    %c64_i32 = arith.constant 64 : i32
    %2 = tpu.dynamic_rotate %1 by %c64_i32 dim 1 : vector<1x128xf32>, i32 -> vector<1x128xf32>
    %3 = arith.addf %1, %2 : vector<1x128xf32>
    %c32_i32 = arith.constant 32 : i32
    %4 = tpu.dynamic_rotate %3 by %c32_i32 dim 1 : vector<1x128xf32>, i32 -> vector<1x128xf32>
    %5 = arith.addf %3, %4 : vector<1x128xf32>
    %6 = tpu.iota {dimensions = array<i32: 1>} : vector<1x128xi32>
    %c32_i32_2 = arith.constant 32 : i32
    %7 = vector.broadcast %c32_i32_2 : i32 to vector<1x128xi32>
    %8 = arith.cmpi slt, %6, %7 : vector<1x128xi32>
    %cst_3 = arith.constant 0.000000e+00 : f32
    %9 = vector.broadcast %cst_3 : f32 to vector<1x128xf32>
    %10 = arith.select %8, %5, %9 : vector<1x128xi1>, vector<1x128xf32>
    %cst_4 = arith.constant 1.250000e-01 : f32
    %11 = vector.broadcast %cst_4 : f32 to vector<1x128xf32>
    %12 = arith.mulf %10, %11 : vector<1x128xf32>
    %c0_5 = arith.constant 0 : index
    %c0_6 = arith.constant 0 : index
    %c0_7 = arith.constant 0 : index
    %13 = vector.load %arg2[%c0_5, %c0_6, %c0_7] : memref<1x2x128xf32, #tpu.memory_space<vmem>>, vector<1x2x128xf32>
    %cst_8 = arith.constant dense<0.000000e+00> : vector<1x128xf32>
    %14 = vector.multi_reduction <add>, %13, %cst_8 [1] : vector<1x2x128xf32> to vector<1x128xf32>
    %c64_i32_9 = arith.constant 64 : i32
    %15 = tpu.dynamic_rotate %14 by %c64_i32_9 dim 1 : vector<1x128xf32>, i32 -> vector<1x128xf32>
    %16 = arith.addf %14, %15 : vector<1x128xf32>
    %c32_i32_10 = arith.constant 32 : i32
    %17 = tpu.dynamic_rotate %16 by %c32_i32_10 dim 1 : vector<1x128xf32>, i32 -> vector<1x128xf32>
    %18 = arith.addf %16, %17 : vector<1x128xf32>
    %19 = tpu.iota {dimensions = array<i32: 1>} : vector<1x128xi32>
    %c32_i32_11 = arith.constant 32 : i32
    %20 = vector.broadcast %c32_i32_11 : i32 to vector<1x128xi32>
    %21 = arith.cmpi slt, %19, %20 : vector<1x128xi32>
    %cst_12 = arith.constant 0.000000e+00 : f32
    %22 = vector.broadcast %cst_12 : f32 to vector<1x128xf32>
    %23 = arith.select %21, %18, %22 : vector<1x128xi1>, vector<1x128xf32>
    %cst_13 = arith.constant 1.250000e-01 : f32
    %24 = vector.broadcast %cst_13 : f32 to vector<1x128xf32>
    %25 = arith.mulf %23, %24 : vector<1x128xf32>
    %c0_14 = arith.constant 0 : index
    %c0_15 = arith.constant 0 : index
    %c0_16 = arith.constant 0 : index
    %26 = vector.load %arg3[%c0_14, %c0_15, %c0_16] : memref<1x2x128xf32, #tpu.memory_space<vmem>>, vector<1x2x128xf32>
    %cst_17 = arith.constant dense<0.000000e+00> : vector<1x128xf32>
    %27 = vector.multi_reduction <add>, %26, %cst_17 [1] : vector<1x2x128xf32> to vector<1x128xf32>
    %c64_i32_18 = arith.constant 64 : i32
    %28 = tpu.dynamic_rotate %27 by %c64_i32_18 dim 1 : vector<1x128xf32>, i32 -> vector<1x128xf32>
    %29 = arith.addf %27, %28 : vector<1x128xf32>
    %c32_i32_19 = arith.constant 32 : i32
    %30 = tpu.dynamic_rotate %29 by %c32_i32_19 dim 1 : vector<1x128xf32>, i32 -> vector<1x128xf32>
    %31 = arith.addf %29, %30 : vector<1x128xf32>
    %32 = tpu.iota {dimensions = array<i32: 1>} : vector<1x128xi32>
    %c32_i32_20 = arith.constant 32 : i32
    %33 = vector.broadcast %c32_i32_20 : i32 to vector<1x128xi32>
    %34 = arith.cmpi slt, %32, %33 : vector<1x128xi32>
    %cst_21 = arith.constant 0.000000e+00 : f32
    %35 = vector.broadcast %cst_21 : f32 to vector<1x128xf32>
    %36 = arith.select %34, %31, %35 : vector<1x128xi1>, vector<1x128xf32>
    %cst_22 = arith.constant 1.250000e-01 : f32
    %37 = vector.broadcast %cst_22 : f32 to vector<1x128xf32>
    %38 = arith.mulf %36, %37 : vector<1x128xf32>
    %39 = arith.mulf %12, %12 : vector<1x128xf32>
    %cst_23 = arith.constant dense<0.000000e+00> : vector<1xf32>
    %40 = vector.multi_reduction <add>, %39, %cst_23 [1] : vector<1x128xf32> to vector<1xf32>
    %41 = vector.shape_cast %40 : vector<1xf32> to vector<1x1xf32>
    %42 = arith.mulf %25, %25 : vector<1x128xf32>
    %cst_24 = arith.constant dense<0.000000e+00> : vector<1xf32>
    %43 = vector.multi_reduction <add>, %42, %cst_24 [1] : vector<1x128xf32> to vector<1xf32>
    %44 = vector.shape_cast %43 : vector<1xf32> to vector<1x1xf32>
    %45 = arith.mulf %38, %38 : vector<1x128xf32>
    %cst_25 = arith.constant dense<0.000000e+00> : vector<1xf32>
    %46 = vector.multi_reduction <add>, %45, %cst_25 [1] : vector<1x128xf32> to vector<1xf32>
    %47 = vector.shape_cast %46 : vector<1xf32> to vector<1x1xf32>
    %48 = arith.mulf %12, %25 : vector<1x128xf32>
    %cst_26 = arith.constant dense<0.000000e+00> : vector<1xf32>
    %49 = vector.multi_reduction <add>, %48, %cst_26 [1] : vector<1x128xf32> to vector<1xf32>
    %50 = vector.shape_cast %49 : vector<1xf32> to vector<1x1xf32>
    %51 = arith.mulf %12, %38 : vector<1x128xf32>
    %cst_27 = arith.constant dense<0.000000e+00> : vector<1xf32>
    %52 = vector.multi_reduction <add>, %51, %cst_27 [1] : vector<1x128xf32> to vector<1xf32>
    %53 = vector.shape_cast %52 : vector<1xf32> to vector<1x1xf32>
    %54 = arith.mulf %41, %44 : vector<1x1xf32>
    %cst_28 = arith.constant 1.000000e-16 : f32
    %55 = vector.broadcast %cst_28 : f32 to vector<1x1xf32>
    %56 = arith.maximumf %54, %55 : vector<1x1xf32>
    %57 = math.sqrt %56 : vector<1x1xf32>
    %58 = arith.divf %50, %57 : vector<1x1xf32>
    %59 = arith.mulf %41, %47 : vector<1x1xf32>
    %cst_29 = arith.constant 1.000000e-16 : f32
    %60 = vector.broadcast %cst_29 : f32 to vector<1x1xf32>
    %61 = arith.maximumf %59, %60 : vector<1x1xf32>
    %62 = math.sqrt %61 : vector<1x1xf32>
    %63 = arith.divf %53, %62 : vector<1x1xf32>
    %64 = arith.subf %63, %58 : vector<1x1xf32>
    %cst_30 = arith.constant 3.000000e-01 : f32
    %65 = vector.broadcast %cst_30 : f32 to vector<1x1xf32>
    %66 = arith.addf %64, %65 : vector<1x1xf32>
    %cst_31 = arith.constant 0.000000e+00 : f32
    %67 = vector.broadcast %cst_31 : f32 to vector<1x1xf32>
    %68 = arith.maximumf %66, %67 : vector<1x1xf32>
    %69 = tpu.iota {dimensions = array<i32: 0>} : vector<1x1xi32>
    %c1_i32 = arith.constant 1 : i32
    %70 = arith.muli %arg0, %c1_i32 : i32
    %71 = vector.broadcast %70 : i32 to vector<1x1xi32>
    %72 = arith.addi %69, %71 : vector<1x1xi32>
    %c2_i32 = arith.constant 2 : i32
    %73 = vector.broadcast %c2_i32 : i32 to vector<1x1xi32>
    %74 = arith.cmpi slt, %72, %73 : vector<1x1xi32>
    %cst_32 = arith.constant 0.000000e+00 : f32
    %75 = vector.broadcast %cst_32 : f32 to vector<1x1xf32>
    %76 = arith.select %74, %68, %75 : vector<1x1xi1>, vector<1x1xf32>
    %77 = vector.shape_cast %76 : vector<1x1xf32> to vector<1x1x1xf32>
    %cst_33 = arith.constant dense<0.000000e+00> : vector<1xf32>
    %78 = vector.multi_reduction <add>, %77, %cst_33 [1, 2] : vector<1x1x1xf32> to vector<1xf32>
    %79 = vector.shape_cast %78 : vector<1xf32> to vector<1x1x1xf32>
    %80 = vector.extract %79[0, 0, 0] : f32 from vector<1x1x1xf32>
    %cst_34 = arith.constant 3.500000e-01 : f32
    %81 = arith.mulf %cst_34, %80 : f32
    %c1_i32_35 = arith.constant 1 : i32
    %82 = arith.cmpi eq, %arg0, %c1_i32_35 : i32
    %83 = arith.extui %82 : i1 to i32
    %c0_i32 = arith.constant 0 : i32
    %84 = arith.cmpi ne, %83, %c0_i32 : i32
    scf.if %84 {
      %c0_38 = arith.constant 0 : index
      %c0_39 = arith.constant 0 : index
      %88 = vector.load %arg4[%c0_38, %c0_39] : memref<1x2xf32, #tpu.memory_space<vmem>>, vector<1x2xf32>
      %c0_40 = arith.constant 0 : index
      %c0_41 = arith.constant 0 : index
      %89 = vector.load %arg5[%c0_40, %c0_41] : memref<1x2xf32, #tpu.memory_space<vmem>>, vector<1x2xf32>
      %cst_42 = arith.constant 0.000000e+00 : f32
      %90 = vector.broadcast %cst_42 : f32 to vector<1x2xf32>
      %91 = arith.maximumf %88, %90 : vector<1x2xf32>
      %92 = arith.mulf %88, %89 : vector<1x2xf32>
      %93 = arith.subf %91, %92 : vector<1x2xf32>
      %94 = math.absf %88 : vector<1x2xf32>
      %cst_43 = arith.constant 0.000000e+00 : f32
      %95 = vector.broadcast %cst_43 : f32 to vector<1x2xf32>
      %96 = arith.subf %95, %94 : vector<1x2xf32>
      %97 = math.exp %96 : vector<1x2xf32>
      %98 = math.log1p %97 : vector<1x2xf32>
      %99 = arith.addf %93, %98 : vector<1x2xf32>
      %100 = vector.shape_cast %99 : vector<1x2xf32> to vector<1x1x2xf32>
      %cst_44 = arith.constant dense<0.000000e+00> : vector<1xf32>
      %101 = vector.multi_reduction <add>, %100, %cst_44 [1, 2] : vector<1x1x2xf32> to vector<1xf32>
      %102 = vector.shape_cast %101 : vector<1xf32> to vector<1x1x1xf32>
      %103 = vector.extract %102[0, 0, 0] : f32 from vector<1x1x1xf32>
      %cst_45 = arith.constant 2.000000e+00 : f32
      %104 = arith.divf %103, %cst_45 : f32
      %cst_46 = arith.constant 3.000000e-01 : f32
      %105 = arith.mulf %cst_46, %104 : f32
      %106 = arith.addf %81, %105 : f32
      %107 = vector.broadcast %106 : f32 to vector<1x8x128xf32>
      %c0_47 = arith.constant 0 : index
      %c0_48 = arith.constant 0 : index
      %c0_49 = arith.constant 0 : index
      %108 = vector.load %arg6[%c0_47, %c0_48, %c0_49] : memref<1x8x128xf32, #tpu.memory_space<vmem>>, vector<1x8x128xf32>
      tpu.vector_store %arg6[%c0_47, %c0_48, %c0_49], %107 {strides = array<i32>} : memref<1x8x128xf32, #tpu.memory_space<vmem>>, vector<1x8x128xf32>,
    } else {
    }
    %c1_i32_36 = arith.constant 1 : i32
    %85 = arith.cmpi slt, %arg0, %c1_i32_36 : i32
    %86 = arith.extui %85 : i1 to i32
    %c0_i32_37 = arith.constant 0 : i32
    %87 = arith.cmpi ne, %86, %c0_i32_37 : i32
    scf.if %87 {
      %88 = vector.broadcast %81 : f32 to vector<1x8x128xf32>
      %c0_38 = arith.constant 0 : index
      %c0_39 = arith.constant 0 : index
      %c0_40 = arith.constant 0 : index
      %89 = vector.load %arg6[%c0_38, %c0_39, %c0_40] : memref<1x8x128xf32, #tpu.memory_space<vmem>>, vector<1x8x128xf32>
      tpu.vector_store %arg6[%c0_38, %c0_39, %c0_40], %88 {strides = array<i32>} : memref<1x8x128xf32, #tpu.memory_space<vmem>>, vector<1x8x128xf32>,
    } else {
    }
    return
  }
  func.func @transform_0(%arg0: i32) -> (i32, i32, i32) {
    %c0_i32 = arith.constant 0 : i32
    %c0_i32_0 = arith.constant 0 : i32
    %c0_i32_1 = arith.constant 0 : i32
    return %arg0, %c0_i32, %c0_i32_0 : i32, i32, i32
  }
  func.func @transform_1(%arg0: i32) -> (i32, i32, i32) {
    %c0_i32 = arith.constant 0 : i32
    %c0_i32_0 = arith.constant 0 : i32
    %c0_i32_1 = arith.constant 0 : i32
    return %arg0, %c0_i32, %c0_i32_0 : i32, i32, i32
  }
  func.func @transform_2(%arg0: i32) -> (i32, i32, i32) {
    %c0_i32 = arith.constant 0 : i32
    %c0_i32_0 = arith.constant 0 : i32
    %c0_i32_1 = arith.constant 0 : i32
    return %arg0, %c0_i32, %c0_i32_0 : i32, i32, i32
  }
  func.func @transform_3(%arg0: i32) -> (i32, i32) {
    %c0_i32 = arith.constant 0 : i32
    %c0_i32_0 = arith.constant 0 : i32
    %c0_i32_1 = arith.constant 0 : i32
    return %c0_i32, %c0_i32_0 : i32, i32
  }
  func.func @transform_4(%arg0: i32) -> (i32, i32) {
    %c0_i32 = arith.constant 0 : i32
    %c0_i32_0 = arith.constant 0 : i32
    %c0_i32_1 = arith.constant 0 : i32
    return %c0_i32, %c0_i32_0 : i32, i32
  }
  func.func @transform_5(%arg0: i32) -> (i32, i32, i32) {
    %c0_i32 = arith.constant 0 : i32
    %c0_i32_0 = arith.constant 0 : i32
    %c0_i32_1 = arith.constant 0 : i32
    return %arg0, %c0_i32, %c0_i32_0 : i32, i32, i32
  }
}

</mosaic_0001>

<llo_original>
// kernel: tpu_custom_call.1
$region0: #{tpu_custom_call.1}
  #allocation0 [shape = 'u32[]', space=smem, size = 0x4, offset = 0x4, fixed_abs, tag = 'smem constant byte address 0x4 - core index']
  #allocation1 [shape = 'u32[72,128]{1,0:T(1,128)}', space=vmem, size = 0x9000, scoped, tag = 'internal scratch']
  %s0 = inlined_call_operand.hbm [shape: f32[2,2,128], index: 0, kind: input, shape index: {}]
  %s1 = inlined_call_operand.hbm [shape: f32[2,2,128], index: 1, kind: input, shape index: {}]
  %s2 = inlined_call_operand.hbm [shape: f32[2,2,128], index: 2, kind: input, shape index: {}]
  %s3 = inlined_call_operand.vmem [shape: f32[1,2], index: 3, kind: input, shape index: {}]
  %s4 = inlined_call_operand.vmem [shape: f32[1,2], index: 4, kind: input, shape index: {}]
  %s5 = inlined_call_operand.hbm [shape: f32[2,8,128], index: 5, kind: output, shape index: {}]
  %s6 = sld [smem:[#allocation0]]
  $region73: #{tpu_custom_call.1} parent=0
    _
  %s8 = ssub.s32 1, %s6
  %s9 = scalar_select 0, %s8, %s6
  $region1: #{tpu_custom_call.1} parent=0
    #allocation2 [shape = 'u8[2048]{0}', space=vmem, size = 0x800, scoped, tag = 'input window, operand 0']
    #allocation3 [shape = 's32[2]{0}', space=sflag, size = 0x8, scoped, tag = 'scoped memory for tpu_custom_call.1']
    #allocation4 [shape = 's32[2]{0}', space=sflag, size = 0x8, scoped, tag = 'scoped memory for tpu_custom_call.1']
    #allocation5 [shape = 'u8[2048]{0}', space=vmem, size = 0x800, scoped, tag = 'input window, operand 1']
    #allocation6 [shape = 's32[2]{0}', space=sflag, size = 0x8, scoped, tag = 'scoped memory for tpu_custom_call.1']
    #allocation7 [shape = 'u8[2048]{0}', space=vmem, size = 0x800, scoped, tag = 'input window, operand 2']
    #allocation8 [shape = 'u8[8192]{0}', space=vmem, size = 0x2000, scoped, tag = 'output window, operand 0']
    %10 = vsyncpa [#allocation3], 0
    %s11 = scalar_lea.sflag [#allocation3], 1
    %12 = vsyncpa %s11, 0
    %13 = vsyncpa [#allocation6], 0
    %s14 = scalar_lea.sflag [#allocation6], 1
    %15 = vsyncpa %s14, 0
    %16 = vsyncpa [#allocation4], 0
    %s17 = scalar_lea.sflag [#allocation4], 1
    %18 = vsyncpa %s17, 0
    loop: start=0, step=1, limit=4
    $region2: #{tpu_custom_call.1} parent=1 // loop_pre_header
      _
    $region3: #{tpu_custom_call.1} parent=1 // loop_header
      %s20 = sphi 0, %s24
      %p21 = scmp.ge.s32.totalorder %s20, 4
      %s30 = sphi 0, %s32
      %s33 = sphi 0, %s30
      %s34 = sphi 0, %s33
      %s50 = sphi 0, %s34
      %s56 = sphi 0, %s58
      %s59 = sphi 0, %s56
      %s60 = sphi 0, %s59
      %s76 = sphi 0, %s60
      %s82 = sphi 0, %s84
      %s85 = sphi 0, %s82
      %s86 = sphi 0, %s85
      %s102 = sphi 0, %s86
      %s106 = sphi 0, %s106
      %s108 = sphi 0, %s106
      %s109 = sphi 0, %s108
      %s123 = sphi 0, %s109
      %s127 = sphi 0, %s127
      %s129 = sphi 0, %s127
      %s130 = sphi 0, %s129
      %s144 = sphi 0, %s130
      %s150 = sphi 0, %s152
      %s153 = sphi 0, %s150
      %s154 = sphi 0, %s153
      %s170 = sphi 0, %s154
    $region4: #{tpu_custom_call.1} parent=1 // loop_header_branch
      %23 = sbr.rel (%p21) target = $region8
    $region5: #{tpu_custom_call.1} parent=1 // loop_body
      %s25 = ssub.s32 %s20, 1
      %s26 = ssub.s32 %s20, 2
      %s27 = sadd.s32 %s20, 1
      %s28 = ssub.s32 %s20, %s27
      %p29 = scmp.eq.s32.totalorder %s28, 0
      %s31 = sadd.s32 %s30, 1
      %s32 = scalar_select %p29, %s30, %s31
      %p35 = pneg %p29
      %p36 = scmp.eq.s32.totalorder %s20, 1
      %p37 = por %p35, %p36
      %p38 = scmp.ne.s32.totalorder %s30, %s33
      %p39 = scmp.eq.s32.totalorder %s20, 0
      %p40 = por %p38, %p39
      %p41 = scmp.ne.s32.totalorder %s30, %s33
      %p42 = scmp.eq.s32.totalorder %s25, 1
      %p43 = por %p41, %p42
      %p44 = scmp.ne.s32.totalorder %s33, %s34
      %p45 = scmp.eq.s32.totalorder %s25, 0
      %p46 = por %p44, %p45
      %p47 = scmp.ne.s32.totalorder %s33, %s34
      %p48 = scmp.eq.s32.totalorder %s26, 1
      %p49 = por %p47, %p48
      %p51 = scmp.ne.s32.totalorder %s34, %s50
      %p52 = scmp.eq.s32.totalorder %s26, 0
      %p53 = por %p51, %p52
      %s54 = ssub.s32 %s20, %s27
      %p55 = scmp.eq.s32.totalorder %s54, 0
      %s57 = sadd.s32 %s56, 1
      %s58 = scalar_select %p55, %s56, %s57
      %p61 = pneg %p55
      %p62 = scmp.eq.s32.totalorder %s20, 1
      %p63 = por %p61, %p62
      %p64 = scmp.ne.s32.totalorder %s56, %s59
      %p65 = scmp.eq.s32.totalorder %s20, 0
      %p66 = por %p64, %p65
      %p67 = scmp.ne.s32.totalorder %s56, %s59
      %p68 = scmp.eq.s32.totalorder %s25, 1
      %p69 = por %p67, %p68
      %p70 = scmp.ne.s32.totalorder %s59, %s60
      %p71 = scmp.eq.s32.totalorder %s25, 0
      %p72 = por %p70, %p71
      %p73 = scmp.ne.s32.totalorder %s59, %s60
      %p74 = scmp.eq.s32.totalorder %s26, 1
      %p75 = por %p73, %p74
      %p77 = scmp.ne.s32.totalorder %s60, %s76
      %p78 = scmp.eq.s32.totalorder %s26, 0
      %p79 = por %p77, %p78
      %s80 = ssub.s32 %s20, %s27
      %p81 = scmp.eq.s32.totalorder %s80, 0
      %s83 = sadd.s32 %s82, 1
      %s84 = scalar_select %p81, %s82, %s83
      %p87 = pneg %p81
      %p88 = scmp.eq.s32.totalorder %s20, 1
      %p89 = por %p87, %p88
      %p90 = scmp.ne.s32.totalorder %s82, %s85
      %p91 = scmp.eq.s32.totalorder %s20, 0
      %p92 = por %p90, %p91
      %p93 = scmp.ne.s32.totalorder %s82, %s85
      %p94 = scmp.eq.s32.totalorder %s25, 1
      %p95 = por %p93, %p94
      %p96 = scmp.ne.s32.totalorder %s85, %s86
      %p97 = scmp.eq.s32.totalorder %s25, 0
      %p98 = por %p96, %p97
      %p99 = scmp.ne.s32.totalorder %s85, %s86
      %p100 = scmp.eq.s32.totalorder %s26, 1
      %p101 = por %p99, %p100
      %p103 = scmp.ne.s32.totalorder %s86, %s102
      %p104 = scmp.eq.s32.totalorder %s26, 0
      %p105 = por %p103, %p104
      %s107 = sadd.s32 %s106, 1
      %p110 = scmp.eq.s32.totalorder %s20, 1
      %p111 = scmp.ne.s32.totalorder %s106, %s108
      %p112 = scmp.eq.s32.totalorder %s20, 0
      %p113 = por %p111, %p112
      %p114 = scmp.ne.s32.totalorder %s106, %s108
      %p115 = scmp.eq.s32.totalorder %s25, 1
      %p116 = por %p114, %p115
      %p117 = scmp.ne.s32.totalorder %s108, %s109
      %p118 = scmp.eq.s32.totalorder %s25, 0
      %p119 = por %p117, %p118
      %p120 = scmp.ne.s32.totalorder %s108, %s109
      %p121 = scmp.eq.s32.totalorder %s26, 1
      %p122 = por %p120, %p121
      %p124 = scmp.ne.s32.totalorder %s109, %s123
      %p125 = scmp.eq.s32.totalorder %s26, 0
      %p126 = por %p124, %p125
      %s128 = sadd.s32 %s127, 1
      %p131 = scmp.eq.s32.totalorder %s20, 1
      %p132 = scmp.ne.s32.totalorder %s127, %s129
      %p133 = scmp.eq.s32.totalorder %s20, 0
      %p134 = por %p132, %p133
      %p135 = scmp.ne.s32.totalorder %s127, %s129
      %p136 = scmp.eq.s32.totalorder %s25, 1
      %p137 = por %p135, %p136
      %p138 = scmp.ne.s32.totalorder %s129, %s130
      %p139 = scmp.eq.s32.totalorder %s25, 0
      %p140 = por %p138, %p139
      %p141 = scmp.ne.s32.totalorder %s129, %s130
      %p142 = scmp.eq.s32.totalorder %s26, 1
      %p143 = por %p141, %p142
      %p145 = scmp.ne.s32.totalorder %s130, %s144
      %p146 = scmp.eq.s32.totalorder %s26, 0
      %p147 = por %p145, %p146
      %s148 = ssub.s32 %s20, %s27
      %p149 = scmp.eq.s32.totalorder %s148, 0
      %s151 = sadd.s32 %s150, 1
      %s152 = scalar_select %p149, %s150, %s151
      %p155 = pneg %p149
      %p156 = scmp.eq.s32.totalorder %s20, 1
      %p157 = por %p155, %p156
      %p158 = scmp.ne.s32.totalorder %s150, %s153
      %p159 = scmp.eq.s32.totalorder %s20, 0
      %p160 = por %p158, %p159
      %p161 = scmp.ne.s32.totalorder %s150, %s153
      %p162 = scmp.eq.s32.totalorder %s25, 1
      %p163 = por %p161, %p162
      %p164 = scmp.ne.s32.totalorder %s153, %s154
      %p165 = scmp.eq.s32.totalorder %s25, 0
      %p166 = por %p164, %p165
      %p167 = scmp.ne.s32.totalorder %s153, %s154
      %p168 = scmp.eq.s32.totalorder %s26, 1
      %p169 = por %p167, %p168
      %p171 = scmp.ne.s32.totalorder %s154, %s170
      %p172 = scmp.eq.s32.totalorder %s26, 0
      %p173 = por %p171, %p172
      %p174 = scmp.le.s32.totalorder 1, %s20
      %p175 = scmp.lt.s32.totalorder %s20, 3
      %p176 = pnand %p174, %p175
      %p177 = pneg %p176
      // Predicated region
      $region9: #{tpu_custom_call.1} parent=5 // pred_check
        _
      $region10: #{tpu_custom_call.1} parent=5 // pred_check_branch
        %179 = sbr.rel (%p176) target = $region12
      $region11: #{tpu_custom_call.1} parent=5 // pred_region
        %s180 = ssub.s32 %s20, 1
        // Predicated region
        $region13: #{tpu_custom_call.1} parent=11 // pred_check
          %p181 = pneg %p119
        $region14: #{tpu_custom_call.1} parent=11 // pred_check_branch
          %183 = sbr.rel (%p181) target = $region16
        $region15: #{tpu_custom_call.1} parent=11 // pred_region
          _
        $region16: #{tpu_custom_call.1} parent=11 // pred_fallthru
          _
        // Predicated region
        $region17: #{tpu_custom_call.1} parent=11 // pred_check
          %p184 = pneg %p140
        $region18: #{tpu_custom_call.1} parent=11 // pred_check_branch
          %186 = sbr.rel (%p184) target = $region20
        $region19: #{tpu_custom_call.1} parent=11 // pred_region
          _
        $region20: #{tpu_custom_call.1} parent=11 // pred_fallthru
          _
      $region12: #{tpu_custom_call.1} parent=5 // pred_fallthru
        _
      %p187 = scmp.lt.s32.totalorder %s20, 2
      // Predicated region
      $region21: #{tpu_custom_call.1} parent=5 // pred_check
        %p188 = pneg %p187
      $region22: #{tpu_custom_call.1} parent=5 // pred_check_branch
        %190 = sbr.rel (%p188) target = $region24
      $region23: #{tpu_custom_call.1} parent=5 // pred_region
        // Predicated region
        $region25: #{tpu_custom_call.1} parent=23 // pred_check
          %p191 = pneg %p40
        $region26: #{tpu_custom_call.1} parent=23 // pred_check_branch
          %193 = sbr.rel (%p191) target = $region28
        $region27: #{tpu_custom_call.1} parent=23 // pred_region
          %s194 = sand.u32 %s30, 1
          %s195 = scalar_lea.sflag [#allocation3], %s194
          %s196 = sand.u32 %s30, 1
          %s197 = smul.addr %s196, 2
          %s198 = scalar_lea.vmem [#allocation2], %s197
          %200 = vsyncadd %s195, 0
          %s201 = smul.addr %s20, 2
          %s202 = scalar_lea.hbm %s0, %s201
          %s204 = sshll.u32 %s202, 4
          %s205 = int_to_ptr.hbm [resolvable:$true] %s204
          %s206 = sshll.u32 %s198, 4
          %s207 = int_to_ptr.vmem [resolvable:$true] %s206
          %209 = dma.hbm_to_vmem [thread:$0]  %s205, 32, %s207, %s195
        $region28: #{tpu_custom_call.1} parent=23 // pred_fallthru
          _
        // Predicated region
        $region29: #{tpu_custom_call.1} parent=23 // pred_check
          %p210 = pneg %p66
        $region30: #{tpu_custom_call.1} parent=23 // pred_check_branch
          %212 = sbr.rel (%p210) target = $region32
        $region31: #{tpu_custom_call.1} parent=23 // pred_region
          %s213 = sand.u32 %s20, 1
          %s214 = scalar_lea.sflag [#allocation6], %s213
          %s215 = sand.u32 %s56, 1
          %s216 = smul.addr %s215, 2
          %s217 = scalar_lea.vmem [#allocation5], %s216
          %219 = vsyncadd %s214, 0
          %s220 = smul.addr %s20, 2
          %s221 = scalar_lea.hbm %s1, %s220
          %s223 = sshll.u32 %s221, 4
          %s224 = int_to_ptr.hbm [resolvable:$true] %s223
          %s225 = sshll.u32 %s217, 4
          %s226 = int_to_ptr.vmem [resolvable:$true] %s225
          %228 = dma.hbm_to_vmem [thread:$0]  %s224, 32, %s226, %s214
        $region32: #{tpu_custom_call.1} parent=23 // pred_fallthru
          _
        // Predicated region
        $region33: #{tpu_custom_call.1} parent=23 // pred_check
          %p229 = pneg %p92
        $region34: #{tpu_custom_call.1} parent=23 // pred_check_branch
          %231 = sbr.rel (%p229) target = $region36
        $region35: #{tpu_custom_call.1} parent=23 // pred_region
          %s232 = sand.u32 %s20, 1
          %s233 = scalar_lea.sflag [#allocation6], %s232
          %s234 = sand.u32 %s82, 1
          %s235 = smul.addr %s234, 2
          %s236 = scalar_lea.vmem [#allocation7], %s235
          %238 = vsyncadd %s233, 0
          %s239 = smul.addr %s20, 2
          %s240 = scalar_lea.hbm %s2, %s239
          %s242 = sshll.u32 %s240, 4
          %s243 = int_to_ptr.hbm [resolvable:$true] %s242
          %s244 = sshll.u32 %s236, 4
          %s245 = int_to_ptr.vmem [resolvable:$true] %s244
          %247 = dma.hbm_to_vmem [thread:$0]  %s243, 32, %s245, %s233
        $region36: #{tpu_custom_call.1} parent=23 // pred_fallthru
          _
      $region24: #{tpu_custom_call.1} parent=5 // pred_fallthru
        _
      %p248 = scmp.le.s32.totalorder 1, %s20
      %p249 = scmp.lt.s32.totalorder %s20, 3
      %p250 = pnand %p248, %p249
      %p251 = pneg %p250
      // Predicated region
      $region37: #{tpu_custom_call.1} parent=5 // pred_check
        _
      $region38: #{tpu_custom_call.1} parent=5 // pred_check_branch
        %253 = sbr.rel (%p250) target = $region40
      $region39: #{tpu_custom_call.1} parent=5 // pred_region
        %s254 = ssub.s32 %s20, 1
        %s255 = sand.u32 %s33, 1
        %s256 = scalar_lea.sflag [#allocation3], %s255
        %s257 = sand.u32 %s33, 1
        %s258 = smul.addr %s257, 2
        %s259 = scalar_lea.vmem [#allocation2], %s258
        // Predicated region
        $region41: #{tpu_custom_call.1} parent=39 // pred_check
          %p260 = pneg %p46
        $region42: #{tpu_custom_call.1} parent=39 // pred_check_branch
          %262 = sbr.rel (%p260) target = $region44
        $region43: #{tpu_custom_call.1} parent=39 // pred_region
          %264 = dma.done %s256, 32
        $region44: #{tpu_custom_call.1} parent=39 // pred_fallthru
          _
        %s265 = sand.u32 %s25, 1
        %s266 = scalar_lea.sflag [#allocation6], %s265
        %s267 = sand.u32 %s59, 1
        %s268 = smul.addr %s267, 2
        %s269 = scalar_lea.vmem [#allocation5], %s268
        // Predicated region
        $region45: #{tpu_custom_call.1} parent=39 // pred_check
          %p270 = pneg %p72
        $region46: #{tpu_custom_call.1} parent=39 // pred_check_branch
          %272 = sbr.rel (%p270) target = $region48
        $region47: #{tpu_custom_call.1} parent=39 // pred_region
          %274 = dma.done %s266, 32
        $region48: #{tpu_custom_call.1} parent=39 // pred_fallthru
          _
        %s275 = sand.u32 %s25, 1
        %s276 = scalar_lea.sflag [#allocation6], %s275
        %s277 = sand.u32 %s85, 1
        %s278 = smul.addr %s277, 2
        %s279 = scalar_lea.vmem [#allocation7], %s278
        // Predicated region
        $region49: #{tpu_custom_call.1} parent=39 // pred_check
          %p280 = pneg %p98
        $region50: #{tpu_custom_call.1} parent=39 // pred_check_branch
          %282 = sbr.rel (%p280) target = $region52
        $region51: #{tpu_custom_call.1} parent=39 // pred_region
          %284 = dma.done %s276, 32
        $region52: #{tpu_custom_call.1} parent=39 // pred_fallthru
          _
        %s285 = sand.u32 %s33, 1
        %s286 = scalar_lea.sflag [#allocation3], %s285
        %s287 = sand.u32 %s33, 1
        %s288 = smul.addr %s287, 2
        %s289 = scalar_lea.vmem [#allocation2], %s288
        %p290 = pneg %p46
        %p291 = pneg %p43
        %s292 = sand.u32 %s25, 1
        %s293 = scalar_lea.sflag [#allocation6], %s292
        %s294 = sand.u32 %s59, 1
        %s295 = smul.addr %s294, 2
        %s296 = scalar_lea.vmem [#allocation5], %s295
        %p297 = pneg %p72
        %p298 = pneg %p69
        %s299 = sand.u32 %s25, 1
        %s300 = scalar_lea.sflag [#allocation6], %s299
        %s301 = sand.u32 %s85, 1
        %s302 = smul.addr %s301, 2
        %s303 = scalar_lea.vmem [#allocation7], %s302
        %p304 = pneg %p98
        %p305 = pneg %p95
        %p306 = pneg %p119
        %p307 = pneg %p116
        %p308 = pneg %p140
        %p309 = pneg %p137
        %p310 = pneg %p166
        %p311 = pneg %p163
        %s312 = sand.u32 %s153, 1
        %s313 = scalar_lea.sflag [#allocation4], %s312
        %s314 = sand.u32 %s153, 1
        %s315 = smul.addr %s314, 8
        %s316 = scalar_lea.vmem [#allocation8], %s315
        %v317 = vld [vmem:[%s259] sm:$0x3]
        %vm318 = vcmask 1041408
        %v319 = vsel %vm318, %v317, 0.0
        %v320 = vrot.slane %v319, 4
        %v321 = vadd.f32 %v319, %v320
        %v322 = vrot.slane %v321, 2
        %v323 = vadd.f32 %v321, %v322
        %v324 = vrot.slane %v323, 1
        %v325 = vadd.f32 %v323, %v324
        %326 = vrot.lane.b32.xlu0 %v325, 64
        %v327 = vpop.permute.xlu0 %326
        %v328 = vadd.f32 %v325, %v327
        %329 = vrot.lane.b32.xlu0 %v328, 32
        %v330 = vpop.permute.xlu0 %329
        %v331 = vadd.f32 %v328, %v330
        %v332 = vlaneseq
        %v333 = vand.u32 %v332, 127
        %vm334 = vcmp.lt.s32.totalorder %v333, 32
        %v335 = vsel %vm334, %v331, 0.0
        %v336 = vmul.f32 %v335, 0.125
        %v337 = vld [vmem:[%s269] sm:$0x3]
        %v338 = vsel %vm318, %v337, 0.0
        %v339 = vrot.slane %v338, 4
        %v340 = vadd.f32 %v338, %v339
        %v341 = vrot.slane %v340, 2
        %v342 = vadd.f32 %v340, %v341
        %v343 = vrot.slane %v342, 1
        %v344 = vadd.f32 %v342, %v343
        %345 = vrot.lane.b32.xlu0 %v344, 64
        %v346 = vpop.permute.xlu0 %345
        %v347 = vadd.f32 %v344, %v346
        %348 = vrot.lane.b32.xlu0 %v347, 32
        %v349 = vpop.permute.xlu0 %348
        %v350 = vadd.f32 %v347, %v349
        %v351 = vsel %vm334, %v350, 0.0
        %v352 = vmul.f32 %v351, 0.125
        %v353 = vld [vmem:[%s279] sm:$0x3]
        %v354 = vsel %vm318, %v353, 0.0
        %v355 = vrot.slane %v354, 4
        %v356 = vadd.f32 %v354, %v355
        %v357 = vrot.slane %v356, 2
        %v358 = vadd.f32 %v356, %v357
        %v359 = vrot.slane %v358, 1
        %v360 = vadd.f32 %v358, %v359
        %361 = vrot.lane.b32.xlu0 %v360, 64
        %v362 = vpop.permute.xlu0 %361
        %v363 = vadd.f32 %v360, %v362
        %364 = vrot.lane.b32.xlu0 %v363, 32
        %v365 = vpop.permute.xlu0 %364
        %v366 = vadd.f32 %v363, %v365
        %v367 = vsel %vm334, %v366, 0.0
        %v368 = vmul.f32 %v367, 0.125
        %v369 = vmul.f32 %v336, %v336
        %vm370 = vcmask 1040384
        %v371 = vsel %vm370, %v369, 0.0
        %372 = vadd.xlane.f32.xlu0 %v371
        %v373 = vpop.xlane.xlu0 %372
        %v374 = vmul.f32 %v352, %v352
        %v375 = vsel %vm370, %v374, 0.0
        %376 = vadd.xlane.f32.xlu0 %v375
        %v377 = vpop.xlane.xlu0 %376
        %v378 = vmul.f32 %v368, %v368
        %v379 = vsel %vm370, %v378, 0.0
        %380 = vadd.xlane.f32.xlu0 %v379
        %v381 = vpop.xlane.xlu0 %380
        %v382 = vmul.f32 %v336, %v352
        %v383 = vsel %vm370, %v382, 0.0
        %384 = vadd.xlane.f32.xlu0 %v383
        %v385 = vpop.xlane.xlu0 %384
        %v386 = vmul.f32 %v336, %v368
        %v387 = vsel %vm370, %v386, 0.0
        %388 = vadd.xlane.f32.xlu0 %v387
        %v389 = vpop.xlane.xlu0 %388
        %v390 = vmul.f32 %v373, %v377
        %v391 = vmax.f32 %v390, 1e-16
        %v392 = vrsqrt.pop %v391
        %v393 = vmul.f32 %v392, %v391
        %v394 = vmul.f32 %v393, %v392
        %v395 = vmul.f32 0.5, %v394
        %v396 = vsub.f32 1.5, %v395
        %v397 = vmul.f32 %v392, %v396
        %v398 = vmul.f32 %v391, %v397
        %vm399 = vcmp.eq.f32.partialorder %v391, inf
        %v400 = vsel %vm399, %v391, %v398
        %vm401 = vcmp.eq.f32.partialorder %v391, 0.0
        %v402 = vand.u32 %v391, 2147483648
        %v403 = vsel %vm401, %v402, %v400
        %v404 = vrcp.pop %v403
        %v405 = vmul.f32 %v403, %v404
        %v406 = vsub.f32 1.0, %v405
        %v407 = vmul.f32 %v404, %v406
        %v408 = vadd.f32 %v404, %v407
        %vm409 = vweird.f32 %v403
        %vm410 = vweird.f32 %v404
        %vm411 = vmor %vm409, %vm410
        %v412 = vsel %vm411, %v404, %v408
        %v413 = vand.u32 2147483647, %v403
        %vm414 = vcmp.eq.f32.partialorder %v413, 8.507059e+37
        %v415 = vand.u32 %v403, 2147483648
        %v416 = vor.u32 1.1754944e-38, %v415
        %v417 = vsel %vm414, %v416, %v412
        %v418 = vmul.f32 %v385, %v417
        %v419 = vmul.f32 %v373, %v381
        %v420 = vmax.f32 %v419, 1e-16
        %v421 = vrsqrt.pop %v420
        %v422 = vmul.f32 %v421, %v420
        %v423 = vmul.f32 %v422, %v421
        %v424 = vmul.f32 0.5, %v423
        %v425 = vsub.f32 1.5, %v424
        %v426 = vmul.f32 %v421, %v425
        %v427 = vmul.f32 %v420, %v426
        %vm428 = vcmp.eq.f32.partialorder %v420, inf
        %v429 = vsel %vm428, %v420, %v427
        %vm430 = vcmp.eq.f32.partialorder %v420, 0.0
        %v431 = vand.u32 %v420, 2147483648
        %v432 = vsel %vm430, %v431, %v429
        %v433 = vrcp.pop %v432
        %v434 = vmul.f32 %v432, %v433
        %v435 = vsub.f32 1.0, %v434
        %v436 = vmul.f32 %v433, %v435
        %v437 = vadd.f32 %v433, %v436
        %vm438 = vweird.f32 %v432
        %vm439 = vweird.f32 %v433
        %vm440 = vmor %vm438, %vm439
        %v441 = vsel %vm440, %v433, %v437
        %v442 = vand.u32 2147483647, %v432
        %vm443 = vcmp.eq.f32.partialorder %v442, 8.507059e+37
        %v444 = vand.u32 %v432, 2147483648
        %v445 = vor.u32 1.1754944e-38, %v444
        %v446 = vsel %vm443, %v445, %v441
        %v447 = vmul.f32 %v389, %v446
        %v448 = vsub.f32 %v447, %v418
        %v449 = vadd.f32 %v448, 0.3
        %v450 = vmax.f32 %v449, 0.0
        %v451 = vlaneseq
        %v452 = vshrl.u32 %v451, 7
        %v453 = vstv %s25
        %v454 = vadd.s32 %v452, %v453
        %vm455 = vcmp.lt.s32.totalorder %v454, 2
        %v456 = vsel %vm455, %v450, 0.0
        %v457 = vadd.f32 %v456, 0.0
        %s458 = vtos %v457
        %s459 = smul.f32 %s458, 0.35
        %p460 = scmp.eq.s32.totalorder %s25, 1
        // Predicated region
        $region53: #{tpu_custom_call.1} parent=39 // pred_check
          %p461 = pneg %p460
        $region54: #{tpu_custom_call.1} parent=39 // pred_check_branch
          %463 = sbr.rel (%p461) target = $region56
        $region55: #{tpu_custom_call.1} parent=39 // pred_region
          %v464 = vld [vmem:[%s3] sm:$0x1]
          %v465 = vld [vmem:[%s4] sm:$0x1]
          %v466 = vmax.f32 %v464, 0.0
          %v467 = vmul.f32 %v464, %v465
          %v468 = vsub.f32 %v466, %v467
          %v469 = vand.u32 2147483647, %v464
          %v470 = vsub.f32 0.0, %v469
          %v471 = vmul.f32 %v470, 1.442695
          %v472 = vpow.pop %v471
          %v473 = vadd.f32 %v472, 1.0
          %v474 = vlog2.pop %v473
          %v475 = vmul.f32 %v474, 0.6931472
          %v476 = vmul.f32 -0.5, %v472
          %v477 = vadd.f32 %v476, 1.0
          %v478 = vmul.f32 %v477, %v472
          %v479 = vand.u32 2147483647, %v472
          %vm480 = vcmp.lt.f32.partialorder %v479, 0.0004427343
          %v481 = vsel %vm480, %v478, %v475
          %v482 = vadd.f32 %v468, %v481
          %vm483 = vcmask 8192
          %v484 = vsel %vm483, %v482, 0.0
          %485 = vadd.xlane.f32.xlu0 %v484
          %v486 = vpop.xlane.xlu0 %485
          %v487 = vrot.slane %v486, 4
          %v488 = vadd.f32 %v486, %v487
          %v489 = vrot.slane %v488, 2
          %v490 = vadd.f32 %v488, %v489
          %v491 = vrot.slane %v490, 1
          %v492 = vadd.f32 %v490, %v491
          %s493 = vtos %v492
          %v494 = vrcp.pop 2.0
          %v495 = vmul.f32 2.0, %v494
          %v496 = vsub.f32 1.0, %v495
          %v497 = vmul.f32 %v494, %v496
          %v498 = vadd.f32 %v494, %v497
          %vm499 = vweird.f32 %v494
          %v500 = vsel %vm499, %v494, %v498
          %s501 = vtos %v500
          %s502 = smul.f32 %s493, %s501
          %s503 = smul.f32 %s502, 0.3
          %s504 = sadd.f32 %s459, %s503
          %v505 = vstv %s504
          %506 = vst [vmem:[%s316] sm:$0xff] %v505
        $region56: #{tpu_custom_call.1} parent=39 // pred_fallthru
          _
        %p507 = scmp.lt.s32.totalorder %s25, 1
        // Predicated region
        $region57: #{tpu_custom_call.1} parent=39 // pred_check
          %p508 = pneg %p507
        $region58: #{tpu_custom_call.1} parent=39 // pred_check_branch
          %510 = sbr.rel (%p508) target = $region60
        $region59: #{tpu_custom_call.1} parent=39 // pred_region
          %v511 = vstv %s459
          %512 = vst [vmem:[%s316] sm:$0xff] %v511
        $region60: #{tpu_custom_call.1} parent=39 // pred_fallthru
          _
        %s513 = sand.u32 %s153, 1
        %s514 = scalar_lea.sflag [#allocation4], %s513
        %s515 = sand.u32 %s153, 1
        %s516 = smul.addr %s515, 8
        %s517 = scalar_lea.vmem [#allocation8], %s516
        // Predicated region
        $region61: #{tpu_custom_call.1} parent=39 // pred_check
          %p518 = pneg %p163
        $region62: #{tpu_custom_call.1} parent=39 // pred_check_branch
          %520 = sbr.rel (%p518) target = $region64
        $region63: #{tpu_custom_call.1} parent=39 // pred_region
          %522 = vsyncadd %s514, 0
          %s523 = smul.addr %s25, 8
          %s524 = scalar_lea.hbm %s5, %s523
          %s526 = sshll.u32 %s517, 4
          %s527 = int_to_ptr.vmem [resolvable:$true] %s526
          %s528 = sshll.u32 %s524, 4
          %s529 = int_to_ptr.hbm [resolvable:$true] %s528
          %531 = dma.vmem_to_hbm [thread:$0]  %s527, 128, %s529, %s514
        $region64: #{tpu_custom_call.1} parent=39 // pred_fallthru
          _
      $region40: #{tpu_custom_call.1} parent=5 // pred_fallthru
        _
      %p532 = scmp.le.s32.totalorder 2, %s20
      // Predicated region
      $region65: #{tpu_custom_call.1} parent=5 // pred_check
        %p533 = pneg %p532
      $region66: #{tpu_custom_call.1} parent=5 // pred_check_branch
        %535 = sbr.rel (%p533) target = $region68
      $region67: #{tpu_custom_call.1} parent=5 // pred_region
        %s536 = ssub.s32 %s20, 2
        // Predicated region
        $region69: #{tpu_custom_call.1} parent=67 // pred_check
          %p537 = pneg %p169
        $region70: #{tpu_custom_call.1} parent=67 // pred_check_branch
          %539 = sbr.rel (%p537) target = $region72
        $region71: #{tpu_custom_call.1} parent=67 // pred_region
          %s540 = sand.u32 %s154, 1
          %s541 = scalar_lea.sflag [#allocation4], %s540
          %s542 = sand.u32 %s154, 1
          %s543 = smul.addr %s542, 8
          %s544 = scalar_lea.vmem [#allocation8], %s543
          %546 = dma.done %s541, 128
        $region72: #{tpu_custom_call.1} parent=67 // pred_fallthru
          _
      $region68: #{tpu_custom_call.1} parent=5 // pred_fallthru
        _
    $region6: #{tpu_custom_call.1} parent=1 // loop_footer
      %s24 = sadd.s32 1, %s20
    $region7: #{tpu_custom_call.1} parent=1 // loop_footer_branch
      %19 = sbr.rel target = $region3
    $region8: #{tpu_custom_call.1} parent=1 // loop_exit
      _
    %547 = vsyncpa [#allocation3], 1
    %s548 = scalar_lea.sflag [#allocation3], 1
    %549 = vsyncpa %s548, 1
    %550 = vsyncpa [#allocation6], 1
    %s551 = scalar_lea.sflag [#allocation6], 1
    %552 = vsyncpa %s551, 1
    %553 = vsyncpa [#allocation4], 1
    %s554 = scalar_lea.sflag [#allocation4], 1
    %555 = vsyncpa %s554, 1

</llo_original>
